<compile_context>
chip_gen: v7x
topology: tpu7x:2x2x1
jax: 0.10.0
libtpu: 0.0.40
codegen_flags: <defaults>
</compile_context>

<pallas_src>
import jax
import jax.numpy as jnp
from jax import lax
from jax.experimental import pallas as pl
from jax.experimental.pallas import tpu as pltpu
import numpy as np


def shared_network_kernel(x_ref, w_ref, b_ref, o_ref):
    # (tile_b, Cin*L) @ (Cin*L, Odim), f32 accumulation on the MXU.
    y = jnp.dot(x_ref[...], w_ref[...], preferred_element_type=jnp.float32)
    o_ref[...] = jnp.maximum(y + b_ref[...], 0.0)


def fuse_params(w1, b1, w2, b2, seq_len):
    """Fold Conv1d + Linear into one (Cin*L, Odim) weight. Run ONCE at load time."""
    Cout, Cin, K = w1.shape
    Odim = w2.shape[0]
    L = seq_len
    Lout = L - K + 1
    w2r = w2.reshape(Odim, Cout, Lout)                       # w2r[o, co, t]
    # A[o, ci, k, t] = sum_co w1[co, ci, k] * w2r[o, co, t]
    A = jnp.einsum('cik,oct->oikt', w1, w2r)
    wf = jnp.zeros((Odim, Cin, L), jnp.float32)
    for k in range(K):                                       # scatter: l = t + k
        wf = wf.at[:, :, k:k + Lout].add(A[:, :, k, :])
    # w_fused[(ci*L + l), o] = wf[o, ci, l]  -- matches row-major flatten of NCL x.
    w_fused = jnp.transpose(wf, (1, 2, 0)).reshape(Cin * L, Odim)
    b_fused = b2 + jnp.einsum('oct,c->o', w2r, b1)
    # bf16 weights halve HBM weight traffic; bias / accumulation / ReLU stay f32.
    return w_fused.astype(jnp.bfloat16), b_fused.reshape(1, Odim).astype(jnp.float32)


@jax.jit
def shared_network_forward(x, w_fused, b_fused):
    """x: (B, Cin, L) f32 (PyTorch NCL layout). Returns (B, Odim) f32."""
    B, Cin, L = x.shape
    D, Odim = w_fused.shape
    assert D == Cin * L
    # Row-major flatten of (Cin, L) matches the fused-weight layout exactly;
    # this is a pure view, no data movement.  bf16 activations halve HBM reads.
    x2d = x.reshape(B, D).astype(jnp.bfloat16)

    # Batch tiling: whole batch in one block when tiny; 128-row tiles (parallel
    # grid axis, double-buffered activation streaming) once batch scales.
    tile_b = 128 if (B > 128 and B % 128 == 0) else B
    grid = (pl.cdiv(B, tile_b),)

    return pl.pallas_call(
        shared_network_kernel,
        out_shape=jax.ShapeDtypeStruct((B, Odim), jnp.float32),
        grid_spec=pltpu.PrefetchScalarGridSpec(
            num_scalar_prefetch=0,
            grid=grid,
            in_specs=[
                pl.BlockSpec((tile_b, D), lambda i: (i, 0)),   # activations stream
                pl.BlockSpec((D, Odim), lambda i: (0, 0)),     # weight-stationary
                pl.BlockSpec((1, Odim), lambda i: (0, 0)),     # bias-stationary
            ],
            out_specs=pl.BlockSpec((tile_b, Odim), lambda i: (i, 0)),
        ),
        compiler_params=pltpu.CompilerParams(
            dimension_semantics=("parallel",),
            vmem_limit_bytes=32 * 1024 * 1024,   # comfortably within v5e/v6e/v7x VMEM
        ),
    )(x2d, w_fused, b_fused)


def reference_forward(x, w1, b1, w2, b2):
    """Pure-JAX f32 reference matching the PyTorch module exactly."""
    conv = lax.conv_general_dilated(
        x, w1, window_strides=(1,), padding="VALID",
        dimension_numbers=("NCH", "OIH", "NCH"))
    conv = conv + b1[None, :, None]                  # (B, Cout, Lout)
    flat = conv.reshape(conv.shape[0], -1)           # PyTorch channel-major flatten
    return jnp.maximum(flat @ w2.T + b2, 0.0)


if __name__ == "__main__":
    # Module defaults: input_dim=64, output_dim=128, sequence_length=24.
    B, Cin, L = 2, 64, 24
    Cout, K, Odim = 128, 3, 128
    Lout = L - K + 1

    key = jax.random.PRNGKey(0)
    kx, k1, k2, k3, k4 = jax.random.split(key, 5)
    x = jax.random.normal(kx, (B, Cin, L), dtype=jnp.float32)
    w1 = jax.random.normal(k1, (Cout, Cin, K), dtype=jnp.float32) * 0.05
    b1 = jax.random.normal(k2, (Cout,), dtype=jnp.float32) * 0.05
    w2 = jax.random.normal(k3, (Odim, Cout * Lout), dtype=jnp.float32) * 0.02
    b2 = jax.random.normal(k4, (Odim,), dtype=jnp.float32) * 0.02

    # Fold the two linear layers ONCE (parameter-load time), not per forward call.
    w_fused, b_fused = jax.block_until_ready(fuse_params(w1, b1, w2, b2, L))

    out = shared_network_forward(x, w_fused, b_fused)
    out = jax.block_until_ready(out)

    ref = reference_forward(x, w1, b1, w2, b2)
    np.testing.assert_allclose(np.asarray(out), np.asarray(ref), rtol=1e-2, atol=1e-2)
    assert out.shape == (B, Odim)

    print("KERNEL_OK")
</pallas_src>

<mosaic_0001>
module attributes {stable_mosaic.version = 11 : i64} {
  func.func @shared_network_kernel(%arg0: i32, %arg1: memref<2x1536xbf16, #tpu.memory_space<vmem>>, %arg2: memref<1536x128xbf16, #tpu.memory_space<vmem>>, %arg3: memref<1x128xf32, #tpu.memory_space<vmem>>, %arg4: memref<2x128xf32, #tpu.memory_space<vmem>>) attributes {dimension_semantics = [#tpu.dimension_semantics<parallel>], iteration_bounds = array<i64: 1>, scalar_prefetch = 0 : i64, scratch_operands = 0 : i64, tpu.core_type = #tpu.core_type<tc>, window_params = [{transform_indices = @transform_0, window_bounds = array<i64: 2, 1536>}, {pipeline_mode = #tpu.pipeline_mode<synchronous>, transform_indices = @transform_1, window_bounds = array<i64: 1536, 128>}, {pipeline_mode = #tpu.pipeline_mode<synchronous>, transform_indices = @transform_2, window_bounds = array<i64: 1, 128>}, {transform_indices = @transform_3, window_bounds = array<i64: 2, 128>}]} {
    %c0 = arith.constant 0 : index
    %c0_0 = arith.constant 0 : index
    %0 = vector.load %arg1[%c0, %c0_0] : memref<2x1536xbf16, #tpu.memory_space<vmem>>, vector<2x1536xbf16>
    %c0_1 = arith.constant 0 : index
    %c0_2 = arith.constant 0 : index
    %1 = vector.load %arg2[%c0_1, %c0_2] : memref<1536x128xbf16, #tpu.memory_space<vmem>>, vector<1536x128xbf16>
    %cst = arith.constant dense<0.000000e+00> : vector<2x128xf32>
    %2 = tpu.matmul %0, %1, %cst {dimension_numbers = #tpu.dot_dimension_numbers<[1], [0], [0], [1], [0, 0, 1, 1], [], []>} : vector<2x1536xbf16>, vector<1536x128xbf16>, vector<2x128xf32> -> vector<2x128xf32>
    %c0_3 = arith.constant 0 : index
    %c0_4 = arith.constant 0 : index
    %3 = vector.load %arg3[%c0_3, %c0_4] : memref<1x128xf32, #tpu.memory_space<vmem>>, vector<1x128xf32>
    %4 = vector.broadcast %3 : vector<1x128xf32> to vector<2x128xf32>
    %5 = arith.addf %2, %4 : vector<2x128xf32>
    %cst_5 = arith.constant 0.000000e+00 : f32
    %6 = vector.broadcast %cst_5 : f32 to vector<2x128xf32>
    %7 = arith.maximumf %5, %6 : vector<2x128xf32>
    %c0_6 = arith.constant 0 : index
    %c0_7 = arith.constant 0 : index
    %8 = vector.load %arg4[%c0_6, %c0_7] : memref<2x128xf32, #tpu.memory_space<vmem>>, vector<2x128xf32>
    tpu.vector_store %arg4[%c0_6, %c0_7], %7 {strides = array<i32>} : memref<2x128xf32, #tpu.memory_space<vmem>>, vector<2x128xf32>,
    return
  }
  func.func @transform_0(%arg0: i32) -> (i32, i32) {
    %c0_i32 = arith.constant 0 : i32
    %c0_i32_0 = arith.constant 0 : i32
    return %arg0, %c0_i32 : i32, i32
  }
  func.func @transform_1(%arg0: i32) -> (i32, i32) {
    %c0_i32 = arith.constant 0 : i32
    %c0_i32_0 = arith.constant 0 : i32
    %c0_i32_1 = arith.constant 0 : i32
    return %c0_i32, %c0_i32_0 : i32, i32
  }
  func.func @transform_2(%arg0: i32) -> (i32, i32) {
    %c0_i32 = arith.constant 0 : i32
    %c0_i32_0 = arith.constant 0 : i32
    %c0_i32_1 = arith.constant 0 : i32
    return %c0_i32, %c0_i32_0 : i32, i32
  }
  func.func @transform_3(%arg0: i32) -> (i32, i32) {
    %c0_i32 = arith.constant 0 : i32
    %c0_i32_0 = arith.constant 0 : i32
    return %arg0, %c0_i32 : i32, i32
  }
}

</mosaic_0001>

<llo_original>
// kernel: shared_network_forward.1
$region0: #{shared_network_forward.1}
  #allocation0 [shape = 'u32[]', space=smem, size = 0x4, offset = 0x4, fixed_abs, tag = 'smem constant byte address 0x4 - core index']
  #allocation1 [shape = 'u32[144,128]{1,0:T(1,128)}', space=vmem, size = 0x12000, scoped, tag = 'internal scratch']
  %s0 = inlined_call_operand.vmem [shape: bf16[2,1536], index: 0, kind: input, shape index: {}]
  %s1 = inlined_call_operand.hbm [shape: bf16[1536,128], index: 1, kind: input, shape index: {}]
  %s2 = inlined_call_operand.vmem [shape: f32[1,128], index: 2, kind: input, shape index: {}]
  %s3 = inlined_call_operand.hbm [shape: f32[2,128], index: 3, kind: output, shape index: {}]
  %s4 = sld [smem:[#allocation0]]
  $region26: #{shared_network_forward.1} parent=0
    _
  %s6 = ssub.s32 1, %s4
  %s7 = scalar_select 0, %s6, %s4
  $region1: #{shared_network_forward.1} parent=0
    #allocation2 [shape = 'u8[393216]{0}', space=vmem, size = 0x60000, scoped, tag = 'input window, operand 1, single buffered']
    #allocation3 [shape = 's32[1]{0}', space=sflag, size = 0x4, scoped, tag = 'scoped memory for shared_network_forward.1']
    #allocation4 [shape = 's32[1]{0}', space=sflag, size = 0x4, scoped, tag = 'scoped memory for shared_network_forward.1']
    #allocation5 [shape = 'u8[1024]{0}', space=vmem, size = 0x400, scoped, tag = 'output window, operand 0, single buffered']
    %8 = vsyncpa [#allocation3], 0
    %9 = vsyncpa [#allocation4], 0
    // Predicated region
    $region2: #{shared_network_forward.1} parent=1 // pred_check
      _
    $region3: #{shared_network_forward.1} parent=1 // pred_check_branch
      %11 = sbr.rel (0) target = $region5
    $region4: #{shared_network_forward.1} parent=1 // pred_region
      _
    $region5: #{shared_network_forward.1} parent=1 // pred_fallthru
      _
    // Predicated region
    $region6: #{shared_network_forward.1} parent=1 // pred_check
      _
    $region7: #{shared_network_forward.1} parent=1 // pred_check_branch
      %13 = sbr.rel (0) target = $region9
    $region8: #{shared_network_forward.1} parent=1 // pred_region
      %s15 = ssub.s32 12288, 12288
      %16 = vsyncadd [#allocation3], %s15
      %s17 = sshll.u32 [#allocation2], 4
      %s18 = int_to_ptr.vmem [resolvable:$true] %s17
      %23 = dma.hbm_to_vmem [thread:$0]  %s1, 12288, %s18, [#allocation3], 64, 64, 4
    $region9: #{shared_network_forward.1} parent=1 // pred_fallthru
      _
    // Predicated region
    $region10: #{shared_network_forward.1} parent=1 // pred_check
      _
    $region11: #{shared_network_forward.1} parent=1 // pred_check_branch
      %25 = sbr.rel (0) target = $region13
    $region12: #{shared_network_forward.1} parent=1 // pred_region
      _
    $region13: #{shared_network_forward.1} parent=1 // pred_fallthru
      _
    // Predicated region
    $region14: #{shared_network_forward.1} parent=1 // pred_check
      _
    $region15: #{shared_network_forward.1} parent=1 // pred_check_branch
      %27 = sbr.rel (0) target = $region17
    $region16: #{shared_network_forward.1} parent=1 // pred_region
      %28 = dma.done [#allocation3], 12288
    $region17: #{shared_network_forward.1} parent=1 // pred_fallthru
      _
    %v30 = vld [vmem:[%s0] sm:$0xff]
    %v31 = vld [vmem:[%s0 + $0x8] sm:$0xf]
    %v32 = vld [vmem:[#allocation2] sm:$0xf]
    %v33 = vld [vmem:[#allocation2 + $0x4] sm:$0xf]
    %v34 = vld [vmem:[#allocation2 + $0x8] sm:$0xf]
    %v35 = vld [vmem:[#allocation2 + $0xc] sm:$0xf]
    %v36 = vld [vmem:[#allocation2 + $0x10] sm:$0xf]
    %v37 = vld [vmem:[#allocation2 + $0x14] sm:$0xf]
    %v38 = vld [vmem:[#allocation2 + $0x18] sm:$0xf]
    %v39 = vld [vmem:[#allocation2 + $0x1c] sm:$0xf]
    %v40 = vld [vmem:[#allocation2 + $0x20] sm:$0xf]
    %v41 = vld [vmem:[#allocation2 + $0x24] sm:$0xf]
    %v42 = vld [vmem:[#allocation2 + $0x28] sm:$0xf]
    %v43 = vld [vmem:[#allocation2 + $0x2c] sm:$0xf]
    %v44 = vld [vmem:[#allocation2 + $0x30] sm:$0xf]
    %v45 = vld [vmem:[#allocation2 + $0x34] sm:$0xf]
    %v46 = vld [vmem:[#allocation2 + $0x38] sm:$0xf]
    %v47 = vld [vmem:[#allocation2 + $0x3c] sm:$0xf]
    %v48 = vld [vmem:[#allocation2 + $0x40] sm:$0xf]
    %v49 = vld [vmem:[#allocation2 + $0x44] sm:$0xf]
    %v50 = vld [vmem:[#allocation2 + $0x48] sm:$0xf]
    %v51 = vld [vmem:[#allocation2 + $0x4c] sm:$0xf]
    %v52 = vld [vmem:[#allocation2 + $0x50] sm:$0xf]
    %v53 = vld [vmem:[#allocation2 + $0x54] sm:$0xf]
    %v54 = vld [vmem:[#allocation2 + $0x58] sm:$0xf]
    %v55 = vld [vmem:[#allocation2 + $0x5c] sm:$0xf]
    %v56 = vld [vmem:[#allocation2 + $0x60] sm:$0xf]
    %v57 = vld [vmem:[#allocation2 + $0x64] sm:$0xf]
    %v58 = vld [vmem:[#allocation2 + $0x68] sm:$0xf]
    %v59 = vld [vmem:[#allocation2 + $0x6c] sm:$0xf]
    %v60 = vld [vmem:[#allocation2 + $0x70] sm:$0xf]
    %v61 = vld [vmem:[#allocation2 + $0x74] sm:$0xf]
    %v62 = vld [vmem:[#allocation2 + $0x78] sm:$0xf]
    %v63 = vld [vmem:[#allocation2 + $0x7c] sm:$0xf]
    %v64 = vld [vmem:[#allocation2 + $0x80] sm:$0xf]
    %v65 = vld [vmem:[#allocation2 + $0x84] sm:$0xf]
    %v66 = vld [vmem:[#allocation2 + $0x88] sm:$0xf]
    %v67 = vld [vmem:[#allocation2 + $0x8c] sm:$0xf]
    %v68 = vld [vmem:[#allocation2 + $0x90] sm:$0xf]
    %v69 = vld [vmem:[#allocation2 + $0x94] sm:$0xf]
    %v70 = vld [vmem:[#allocation2 + $0x98] sm:$0xf]
    %v71 = vld [vmem:[#allocation2 + $0x9c] sm:$0xf]
    %v72 = vld [vmem:[#allocation2 + $0xa0] sm:$0xf]
    %v73 = vld [vmem:[#allocation2 + $0xa4] sm:$0xf]
    %v74 = vld [vmem:[#allocation2 + $0xa8] sm:$0xf]
    %v75 = vld [vmem:[#allocation2 + $0xac] sm:$0xf]
    %v76 = vld [vmem:[#allocation2 + $0xb0] sm:$0xf]
    %v77 = vld [vmem:[#allocation2 + $0xb4] sm:$0xf]
    %v78 = vld [vmem:[#allocation2 + $0xb8] sm:$0xf]
    %v79 = vld [vmem:[#allocation2 + $0xbc] sm:$0xf]
    %v80 = vld [vmem:[#allocation2 + $0xc0] sm:$0xf]
    %v81 = vld [vmem:[#allocation2 + $0xc4] sm:$0xf]
    %v82 = vld [vmem:[#allocation2 + $0xc8] sm:$0xf]
    %v83 = vld [vmem:[#allocation2 + $0xcc] sm:$0xf]
    %v84 = vld [vmem:[#allocation2 + $0xd0] sm:$0xf]
    %v85 = vld [vmem:[#allocation2 + $0xd4] sm:$0xf]
    %v86 = vld [vmem:[#allocation2 + $0xd8] sm:$0xf]
    %v87 = vld [vmem:[#allocation2 + $0xdc] sm:$0xf]
    %v88 = vld [vmem:[#allocation2 + $0xe0] sm:$0xf]
    %v89 = vld [vmem:[#allocation2 + $0xe4] sm:$0xf]
    %v90 = vld [vmem:[#allocation2 + $0xe8] sm:$0xf]
    %v91 = vld [vmem:[#allocation2 + $0xec] sm:$0xf]
    %v92 = vld [vmem:[#allocation2 + $0xf0] sm:$0xf]
    %v93 = vld [vmem:[#allocation2 + $0xf4] sm:$0xf]
    %v94 = vld [vmem:[#allocation2 + $0xf8] sm:$0xf]
    %v95 = vld [vmem:[#allocation2 + $0xfc] sm:$0xf]
    %v96 = vld [vmem:[#allocation2 + $0x100] sm:$0xf]
    %v97 = vld [vmem:[#allocation2 + $0x104] sm:$0xf]
    %v98 = vld [vmem:[#allocation2 + $0x108] sm:$0xf]
    %v99 = vld [vmem:[#allocation2 + $0x10c] sm:$0xf]
    %v100 = vld [vmem:[#allocation2 + $0x110] sm:$0xf]
    %v101 = vld [vmem:[#allocation2 + $0x114] sm:$0xf]
    %v102 = vld [vmem:[#allocation2 + $0x118] sm:$0xf]
    %v103 = vld [vmem:[#allocation2 + $0x11c] sm:$0xf]
    %v104 = vld [vmem:[#allocation2 + $0x120] sm:$0xf]
    %v105 = vld [vmem:[#allocation2 + $0x124] sm:$0xf]
    %v106 = vld [vmem:[#allocation2 + $0x128] sm:$0xf]
    %v107 = vld [vmem:[#allocation2 + $0x12c] sm:$0xf]
    %v108 = vld [vmem:[#allocation2 + $0x130] sm:$0xf]
    %v109 = vld [vmem:[#allocation2 + $0x134] sm:$0xf]
    %v110 = vld [vmem:[#allocation2 + $0x138] sm:$0xf]
    %v111 = vld [vmem:[#allocation2 + $0x13c] sm:$0xf]
    %v112 = vld [vmem:[#allocation2 + $0x140] sm:$0xf]
    %v113 = vld [vmem:[#allocation2 + $0x144] sm:$0xf]
    %v114 = vld [vmem:[#allocation2 + $0x148] sm:$0xf]
    %v115 = vld [vmem:[#allocation2 + $0x14c] sm:$0xf]
    %v116 = vld [vmem:[#allocation2 + $0x150] sm:$0xf]
    %v117 = vld [vmem:[#allocation2 + $0x154] sm:$0xf]
    %v118 = vld [vmem:[#allocation2 + $0x158] sm:$0xf]
    %v119 = vld [vmem:[#allocation2 + $0x15c] sm:$0xf]
    %v120 = vld [vmem:[#allocation2 + $0x160] sm:$0xf]
    %v121 = vld [vmem:[#allocation2 + $0x164] sm:$0xf]
    %v122 = vld [vmem:[#allocation2 + $0x168] sm:$0xf]
    %v123 = vld [vmem:[#allocation2 + $0x16c] sm:$0xf]
    %v124 = vld [vmem:[#allocation2 + $0x170] sm:$0xf]
    %v125 = vld [vmem:[#allocation2 + $0x174] sm:$0xf]
    %v126 = vld [vmem:[#allocation2 + $0x178] sm:$0xf]
    %v127 = vld [vmem:[#allocation2 + $0x17c] sm:$0xf]
    %v128 = vld [vmem:[#allocation2 + $0x180] sm:$0xf]
    %v129 = vld [vmem:[#allocation2 + $0x184] sm:$0xf]
    %v130 = vld [vmem:[#allocation2 + $0x188] sm:$0xf]
    %v131 = vld [vmem:[#allocation2 + $0x18c] sm:$0xf]
    %v132 = vld [vmem:[#allocation2 + $0x190] sm:$0xf]
    %v133 = vld [vmem:[#allocation2 + $0x194] sm:$0xf]
    %v134 = vld [vmem:[#allocation2 + $0x198] sm:$0xf]
    %v135 = vld [vmem:[#allocation2 + $0x19c] sm:$0xf]
    %v136 = vld [vmem:[#allocation2 + $0x1a0] sm:$0xf]
    %v137 = vld [vmem:[#allocation2 + $0x1a4] sm:$0xf]
    %v138 = vld [vmem:[#allocation2 + $0x1a8] sm:$0xf]
    %v139 = vld [vmem:[#allocation2 + $0x1ac] sm:$0xf]
    %v140 = vld [vmem:[#allocation2 + $0x1b0] sm:$0xf]
    %v141 = vld [vmem:[#allocation2 + $0x1b4] sm:$0xf]
    %v142 = vld [vmem:[#allocation2 + $0x1b8] sm:$0xf]
    %v143 = vld [vmem:[#allocation2 + $0x1bc] sm:$0xf]
    %v144 = vld [vmem:[#allocation2 + $0x1c0] sm:$0xf]
    %v145 = vld [vmem:[#allocation2 + $0x1c4] sm:$0xf]
    %v146 = vld [vmem:[#allocation2 + $0x1c8] sm:$0xf]
    %v147 = vld [vmem:[#allocation2 + $0x1cc] sm:$0xf]
    %v148 = vld [vmem:[#allocation2 + $0x1d0] sm:$0xf]
    %v149 = vld [vmem:[#allocation2 + $0x1d4] sm:$0xf]
    %v150 = vld [vmem:[#allocation2 + $0x1d8] sm:$0xf]
    %v151 = vld [vmem:[#allocation2 + $0x1dc] sm:$0xf]
    %v152 = vld [vmem:[#allocation2 + $0x1e0] sm:$0xf]
    %v153 = vld [vmem:[#allocation2 + $0x1e4] sm:$0xf]
    %v154 = vld [vmem:[#allocation2 + $0x1e8] sm:$0xf]
    %v155 = vld [vmem:[#allocation2 + $0x1ec] sm:$0xf]
    %v156 = vld [vmem:[#allocation2 + $0x1f0] sm:$0xf]
    %v157 = vld [vmem:[#allocation2 + $0x1f4] sm:$0xf]
    %v158 = vld [vmem:[#allocation2 + $0x1f8] sm:$0xf]
    %v159 = vld [vmem:[#allocation2 + $0x1fc] sm:$0xf]
    %v160 = vld [vmem:[#allocation2 + $0x200] sm:$0xf]
    %v161 = vld [vmem:[#allocation2 + $0x204] sm:$0xf]
    %v162 = vld [vmem:[#allocation2 + $0x208] sm:$0xf]
    %v163 = vld [vmem:[#allocation2 + $0x20c] sm:$0xf]
    %v164 = vld [vmem:[#allocation2 + $0x210] sm:$0xf]
    %v165 = vld [vmem:[#allocation2 + $0x214] sm:$0xf]
    %v166 = vld [vmem:[#allocation2 + $0x218] sm:$0xf]
    %v167 = vld [vmem:[#allocation2 + $0x21c] sm:$0xf]
    %v168 = vld [vmem:[#allocation2 + $0x220] sm:$0xf]
    %v169 = vld [vmem:[#allocation2 + $0x224] sm:$0xf]
    %v170 = vld [vmem:[#allocation2 + $0x228] sm:$0xf]
    %v171 = vld [vmem:[#allocation2 + $0x22c] sm:$0xf]
    %v172 = vld [vmem:[#allocation2 + $0x230] sm:$0xf]
    %v173 = vld [vmem:[#allocation2 + $0x234] sm:$0xf]
    %v174 = vld [vmem:[#allocation2 + $0x238] sm:$0xf]
    %v175 = vld [vmem:[#allocation2 + $0x23c] sm:$0xf]
    %v176 = vld [vmem:[#allocation2 + $0x240] sm:$0xf]
    %v177 = vld [vmem:[#allocation2 + $0x244] sm:$0xf]
    %v178 = vld [vmem:[#allocation2 + $0x248] sm:$0xf]
    %v179 = vld [vmem:[#allocation2 + $0x24c] sm:$0xf]
    %v180 = vld [vmem:[#allocation2 + $0x250] sm:$0xf]
    %v181 = vld [vmem:[#allocation2 + $0x254] sm:$0xf]
    %v182 = vld [vmem:[#allocation2 + $0x258] sm:$0xf]
    %v183 = vld [vmem:[#allocation2 + $0x25c] sm:$0xf]
    %v184 = vld [vmem:[#allocation2 + $0x260] sm:$0xf]
    %v185 = vld [vmem:[#allocation2 + $0x264] sm:$0xf]
    %v186 = vld [vmem:[#allocation2 + $0x268] sm:$0xf]
    %v187 = vld [vmem:[#allocation2 + $0x26c] sm:$0xf]
    %v188 = vld [vmem:[#allocation2 + $0x270] sm:$0xf]
    %v189 = vld [vmem:[#allocation2 + $0x274] sm:$0xf]
    %v190 = vld [vmem:[#allocation2 + $0x278] sm:$0xf]
    %v191 = vld [vmem:[#allocation2 + $0x27c] sm:$0xf]
    %v192 = vld [vmem:[#allocation2 + $0x280] sm:$0xf]
    %v193 = vld [vmem:[#allocation2 + $0x284] sm:$0xf]
    %v194 = vld [vmem:[#allocation2 + $0x288] sm:$0xf]
    %v195 = vld [vmem:[#allocation2 + $0x28c] sm:$0xf]
    %v196 = vld [vmem:[#allocation2 + $0x290] sm:$0xf]
    %v197 = vld [vmem:[#allocation2 + $0x294] sm:$0xf]
    %v198 = vld [vmem:[#allocation2 + $0x298] sm:$0xf]
    %v199 = vld [vmem:[#allocation2 + $0x29c] sm:$0xf]
    %v200 = vld [vmem:[#allocation2 + $0x2a0] sm:$0xf]
    %v201 = vld [vmem:[#allocation2 + $0x2a4] sm:$0xf]
    %v202 = vld [vmem:[#allocation2 + $0x2a8] sm:$0xf]
    %v203 = vld [vmem:[#allocation2 + $0x2ac] sm:$0xf]
    %v204 = vld [vmem:[#allocation2 + $0x2b0] sm:$0xf]
    %v205 = vld [vmem:[#allocation2 + $0x2b4] sm:$0xf]
    %v206 = vld [vmem:[#allocation2 + $0x2b8] sm:$0xf]
    %v207 = vld [vmem:[#allocation2 + $0x2bc] sm:$0xf]
    %v208 = vld [vmem:[#allocation2 + $0x2c0] sm:$0xf]
    %v209 = vld [vmem:[#allocation2 + $0x2c4] sm:$0xf]
    %v210 = vld [vmem:[#allocation2 + $0x2c8] sm:$0xf]
    %v211 = vld [vmem:[#allocation2 + $0x2cc] sm:$0xf]
    %v212 = vld [vmem:[#allocation2 + $0x2d0] sm:$0xf]
    %v213 = vld [vmem:[#allocation2 + $0x2d4] sm:$0xf]
    %v214 = vld [vmem:[#allocation2 + $0x2d8] sm:$0xf]
    %v215 = vld [vmem:[#allocation2 + $0x2dc] sm:$0xf]
    %v216 = vld [vmem:[#allocation2 + $0x2e0] sm:$0xf]
    %v217 = vld [vmem:[#allocation2 + $0x2e4] sm:$0xf]
    %v218 = vld [vmem:[#allocation2 + $0x2e8] sm:$0xf]
    %v219 = vld [vmem:[#allocation2 + $0x2ec] sm:$0xf]
    %v220 = vld [vmem:[#allocation2 + $0x2f0] sm:$0xf]
    %v221 = vld [vmem:[#allocation2 + $0x2f4] sm:$0xf]
    %v222 = vld [vmem:[#allocation2 + $0x2f8] sm:$0xf]
    %v223 = vld [vmem:[#allocation2 + $0x2fc] sm:$0xf]
    %v224 = vld [vmem:[%s2] sm:$0x1]
    %v226 = vlaneseq
    %v227 = vshrl.u32 %v226, 7
    %v228 = vsub.s32 0, %v227
    %v229 = vrot.slane %v224, %v228
    %v233 = vcombine.high %v30, %v30
    %v235 = vunpack.c.l.s4 1966171168
    %v236 = vunpack.c.0.s8 %v235
    %v237 = vlaneseq
    %v238 = vshrl.u32 %v237, 7
    %v239 = vsub.s32 %v236, %v238
    %v240 = vrot.slane %v30, %v239
    %v242 = vunpack.c.l.s4 1966171168
    %v243 = vunpack.c.0.s8 %v242
    %v244 = vlaneseq
    %v245 = vshrl.u32 %v244, 7
    %v246 = vsub.s32 %v243, %v245
    %v247 = vrot.slane %v233, %v246
    %v248 = vcombine.high %v240, %v240
    %v249 = vcombine.high %v247, %v247
    %v251 = vunpack.c.l.s4 1966171168
    %v252 = vunpack.c.0.s8 %v251
    %v253 = vlaneseq
    %v254 = vshrl.u32 %v253, 7
    %v255 = vsub.s32 %v252, %v254
    %v256 = vrot.slane %v240, %v255
    %v258 = vunpack.c.l.s4 1966171168
    %v259 = vunpack.c.0.s8 %v258
    %v260 = vlaneseq
    %v261 = vshrl.u32 %v260, 7
    %v262 = vsub.s32 %v259, %v261
    %v263 = vrot.slane %v247, %v262
    %v265 = vunpack.c.l.s4 1966171168
    %v266 = vunpack.c.0.s8 %v265
    %v267 = vlaneseq
    %v268 = vshrl.u32 %v267, 7
    %v269 = vsub.s32 %v266, %v268
    %v270 = vrot.slane %v248, %v269
    %v272 = vunpack.c.l.s4 1966171168
    %v273 = vunpack.c.0.s8 %v272
    %v274 = vlaneseq
    %v275 = vshrl.u32 %v274, 7
    %v276 = vsub.s32 %v273, %v275
    %v277 = vrot.slane %v249, %v276
    %v278 = vcombine.high %v256, %v256
    %v279 = vcombine.high %v263, %v263
    %v280 = vcombine.high %v270, %v270
    %v281 = vcombine.high %v277, %v277
    %v283 = vunpack.c.l.s4 1966171168
    %v284 = vunpack.c.0.s8 %v283
    %v285 = vlaneseq
    %v286 = vshrl.u32 %v285, 7
    %v287 = vsub.s32 %v284, %v286
    %v288 = vrot.slane %v31, %v287
    %v289 = vcombine.high %v288, %v288
    %v291 = vunpack.c.l.s4 1966171168
    %v292 = vunpack.c.0.s8 %v291
    %v293 = vlaneseq
    %v294 = vshrl.u32 %v293, 7
    %v295 = vsub.s32 %v292, %v294
    %v296 = vrot.slane %v288, %v295
    %v298 = vunpack.c.l.s4 1966171168
    %v299 = vunpack.c.0.s8 %v298
    %v300 = vlaneseq
    %v301 = vshrl.u32 %v300, 7
    %v302 = vsub.s32 %v299, %v301
    %v303 = vrot.slane %v289, %v302
    %v304 = vcombine.high %v296, %v296
    %v305 = vcombine.high %v303, %v303
    %v510 = vunpack.c.l.b16 %v32
    %v511 = vunpack.c.l.b16 %v33
    %v512 = vunpack.c.l.b16 %v34
    %v513 = vunpack.c.l.b16 %v35
    %v514 = vunpack.c.l.b16 %v36
    %v515 = vunpack.c.l.b16 %v37
    %v516 = vunpack.c.l.b16 %v38
    %v517 = vunpack.c.l.b16 %v39
    %v518 = vunpack.c.l.b16 %v40
    %v519 = vunpack.c.l.b16 %v41
    %v520 = vunpack.c.l.b16 %v42
    %v521 = vunpack.c.l.b16 %v43
    %v522 = vunpack.c.l.b16 %v44
    %v523 = vunpack.c.l.b16 %v45
    %v524 = vunpack.c.l.b16 %v46
    %v525 = vunpack.c.l.b16 %v47
    %v526 = vunpack.c.l.b16 %v48
    %v527 = vunpack.c.l.b16 %v49
    %v528 = vunpack.c.l.b16 %v50
    %v529 = vunpack.c.l.b16 %v51
    %v530 = vunpack.c.l.b16 %v52
    %v531 = vunpack.c.l.b16 %v53
    %v532 = vunpack.c.l.b16 %v54
    %v533 = vunpack.c.l.b16 %v55
    %v534 = vunpack.c.l.b16 %v56
    %v535 = vunpack.c.l.b16 %v57
    %v536 = vunpack.c.l.b16 %v58
    %v537 = vunpack.c.l.b16 %v59
    %v538 = vunpack.c.l.b16 %v60
    %v539 = vunpack.c.l.b16 %v61
    %v540 = vunpack.c.l.b16 %v62
    %v541 = vunpack.c.l.b16 %v63
    %v542 = vunpack.c.l.b16 %v64
    %v543 = vunpack.c.l.b16 %v65
    %v544 = vunpack.c.l.b16 %v66
    %v545 = vunpack.c.l.b16 %v67
    %v546 = vunpack.c.l.b16 %v68
    %v547 = vunpack.c.l.b16 %v69
    %v548 = vunpack.c.l.b16 %v70
    %v549 = vunpack.c.l.b16 %v71
    %v550 = vunpack.c.l.b16 %v72
    %v551 = vunpack.c.l.b16 %v73
    %v552 = vunpack.c.l.b16 %v74
    %v553 = vunpack.c.l.b16 %v75
    %v554 = vunpack.c.l.b16 %v76
    %v555 = vunpack.c.l.b16 %v77
    %v556 = vunpack.c.l.b16 %v78
    %v557 = vunpack.c.l.b16 %v79
    %v558 = vunpack.c.l.b16 %v80
    %v559 = vunpack.c.l.b16 %v81
    %v560 = vunpack.c.l.b16 %v82
    %v561 = vunpack.c.l.b16 %v83
    %v562 = vunpack.c.l.b16 %v84
    %v563 = vunpack.c.l.b16 %v85
    %v564 = vunpack.c.l.b16 %v86
    %v565 = vunpack.c.l.b16 %v87
    %v566 = vunpack.c.l.b16 %v88
    %v567 = vunpack.c.l.b16 %v89
    %v568 = vunpack.c.l.b16 %v90
    %v569 = vunpack.c.l.b16 %v91
    %v570 = vunpack.c.l.b16 %v92
    %v571 = vunpack.c.l.b16 %v93
    %v572 = vunpack.c.l.b16 %v94
    %v573 = vunpack.c.l.b16 %v95
    %v574 = vunpack.c.l.b16 %v96
    %v575 = vunpack.c.l.b16 %v97
    %v576 = vunpack.c.l.b16 %v98
    %v577 = vunpack.c.l.b16 %v99
    %v578 = vunpack.c.l.b16 %v100
    %v579 = vunpack.c.l.b16 %v101
    %v580 = vunpack.c.l.b16 %v102
    %v581 = vunpack.c.l.b16 %v103
    %v582 = vunpack.c.l.b16 %v104
    %v583 = vunpack.c.l.b16 %v105
    %v584 = vunpack.c.l.b16 %v106
    %v585 = vunpack.c.l.b16 %v107
    %v586 = vunpack.c.l.b16 %v108
    %v587 = vunpack.c.l.b16 %v109
    %v588 = vunpack.c.l.b16 %v110
    %v589 = vunpack.c.l.b16 %v111
    %v590 = vunpack.c.l.b16 %v112
    %v591 = vunpack.c.l.b16 %v113
    %v592 = vunpack.c.l.b16 %v114
    %v593 = vunpack.c.l.b16 %v115
    %v594 = vunpack.c.l.b16 %v116
    %v595 = vunpack.c.l.b16 %v117
    %v596 = vunpack.c.l.b16 %v118
    %v597 = vunpack.c.l.b16 %v119
    %v598 = vunpack.c.l.b16 %v120
    %v599 = vunpack.c.l.b16 %v121
    %v600 = vunpack.c.l.b16 %v122
    %v601 = vunpack.c.l.b16 %v123
    %v602 = vunpack.c.l.b16 %v124
    %v603 = vunpack.c.l.b16 %v125
    %v604 = vunpack.c.l.b16 %v126
    %v605 = vunpack.c.l.b16 %v127
    %v606 = vunpack.c.l.b16 %v128
    %v607 = vunpack.c.l.b16 %v129
    %v608 = vunpack.c.l.b16 %v130
    %v609 = vunpack.c.l.b16 %v131
    %v610 = vunpack.c.l.b16 %v132
    %v611 = vunpack.c.l.b16 %v133
    %v612 = vunpack.c.l.b16 %v134
    %v613 = vunpack.c.l.b16 %v135
    %v614 = vunpack.c.l.b16 %v136
    %v615 = vunpack.c.l.b16 %v137
    %v616 = vunpack.c.l.b16 %v138
    %v617 = vunpack.c.l.b16 %v139
    %v618 = vunpack.c.l.b16 %v140
    %v619 = vunpack.c.l.b16 %v141
    %v620 = vunpack.c.l.b16 %v142
    %v621 = vunpack.c.l.b16 %v143
    %v622 = vunpack.c.l.b16 %v144
    %v623 = vunpack.c.l.b16 %v145
    %v624 = vunpack.c.l.b16 %v146
    %v625 = vunpack.c.l.b16 %v147
    %v626 = vunpack.c.l.b16 %v148
    %v627 = vunpack.c.l.b16 %v149
    %v628 = vunpack.c.l.b16 %v150
    %v629 = vunpack.c.l.b16 %v151
    %v630 = vunpack.c.l.b16 %v152
    %v631 = vunpack.c.l.b16 %v153
    %v632 = vunpack.c.l.b16 %v154
    %v633 = vunpack.c.l.b16 %v155
    %v634 = vunpack.c.l.b16 %v156
    %v635 = vunpack.c.l.b16 %v157
    %v636 = vunpack.c.l.b16 %v158
    %v637 = vunpack.c.l.b16 %v159
    %v638 = vunpack.c.l.b16 %v160
    %v639 = vunpack.c.l.b16 %v161
    %v640 = vunpack.c.l.b16 %v162
    %v641 = vunpack.c.l.b16 %v163
    %v642 = vunpack.c.l.b16 %v164
    %v643 = vunpack.c.l.b16 %v165
    %v644 = vunpack.c.l.b16 %v166
    %v645 = vunpack.c.l.b16 %v167
    %v646 = vunpack.c.l.b16 %v168
    %v647 = vunpack.c.l.b16 %v169
    %v648 = vunpack.c.l.b16 %v170
    %v649 = vunpack.c.l.b16 %v171
    %v650 = vunpack.c.l.b16 %v172
    %v651 = vunpack.c.l.b16 %v173
    %v652 = vunpack.c.l.b16 %v174
    %v653 = vunpack.c.l.b16 %v175
    %v654 = vunpack.c.l.b16 %v176
    %v655 = vunpack.c.l.b16 %v177
    %v656 = vunpack.c.l.b16 %v178
    %v657 = vunpack.c.l.b16 %v179
    %v658 = vunpack.c.l.b16 %v180
    %v659 = vunpack.c.l.b16 %v181
    %v660 = vunpack.c.l.b16 %v182
    %v661 = vunpack.c.l.b16 %v183
    %v662 = vunpack.c.l.b16 %v184
    %v663 = vunpack.c.l.b16 %v185
    %v664 = vunpack.c.l.b16 %v186
    %v665 = vunpack.c.l.b16 %v187
    %v666 = vunpack.c.l.b16 %v188
    %v667 = vunpack.c.l.b16 %v189
    %v668 = vunpack.c.l.b16 %v190
    %v669 = vunpack.c.l.b16 %v191
    %v670 = vunpack.c.l.b16 %v192
    %v671 = vunpack.c.l.b16 %v193
    %v672 = vunpack.c.l.b16 %v194
    %v673 = vunpack.c.l.b16 %v195
    %v674 = vunpack.c.l.b16 %v196
    %v675 = vunpack.c.l.b16 %v197
    %v676 = vunpack.c.l.b16 %v198
    %v677 = vunpack.c.l.b16 %v199
    %v678 = vunpack.c.l.b16 %v200
    %v679 = vunpack.c.l.b16 %v201
    %v680 = vunpack.c.l.b16 %v202
    %v681 = vunpack.c.l.b16 %v203
    %v682 = vunpack.c.l.b16 %v204
    %v683 = vunpack.c.l.b16 %v205
    %v684 = vunpack.c.l.b16 %v206
    %v685 = vunpack.c.l.b16 %v207
    %v686 = vunpack.c.l.b16 %v208
    %v687 = vunpack.c.l.b16 %v209
    %v688 = vunpack.c.l.b16 %v210
    %v689 = vunpack.c.l.b16 %v211
    %v690 = vunpack.c.l.b16 %v212
    %v691 = vunpack.c.l.b16 %v213
    %v692 = vunpack.c.l.b16 %v214
    %v693 = vunpack.c.l.b16 %v215
    %v694 = vunpack.c.l.b16 %v216
    %v695 = vunpack.c.l.b16 %v217
    %v696 = vunpack.c.l.b16 %v218
    %v697 = vunpack.c.l.b16 %v219
    %v698 = vunpack.c.l.b16 %v220
    %v699 = vunpack.c.l.b16 %v221
    %v700 = vunpack.c.l.b16 %v222
    %v701 = vunpack.c.l.b16 %v223
    %v702 = vpack.c.b16 %v511, %v510
    %v703 = vpack.c.b16 %v513, %v512
    %v704 = vpack.c.b16 %v515, %v514
    %v705 = vpack.c.b16 %v517, %v516
    %v706 = vpack.c.b16 %v519, %v518
    %v707 = vpack.c.b16 %v521, %v520
    %v708 = vpack.c.b16 %v523, %v522
    %v709 = vpack.c.b16 %v525, %v524
    %v710 = vpack.c.b16 %v527, %v526
    %v711 = vpack.c.b16 %v529, %v528
    %v712 = vpack.c.b16 %v531, %v530
    %v713 = vpack.c.b16 %v533, %v532
    %v714 = vpack.c.b16 %v535, %v534
    %v715 = vpack.c.b16 %v537, %v536
    %v716 = vpack.c.b16 %v539, %v538
    %v717 = vpack.c.b16 %v541, %v540
    %v718 = vpack.c.b16 %v543, %v542
    %v719 = vpack.c.b16 %v545, %v544
    %v720 = vpack.c.b16 %v547, %v546
    %v721 = vpack.c.b16 %v549, %v548
    %v722 = vpack.c.b16 %v551, %v550
    %v723 = vpack.c.b16 %v553, %v552
    %v724 = vpack.c.b16 %v555, %v554
    %v725 = vpack.c.b16 %v557, %v556
    %v726 = vpack.c.b16 %v559, %v558
    %v727 = vpack.c.b16 %v561, %v560
    %v728 = vpack.c.b16 %v563, %v562
    %v729 = vpack.c.b16 %v565, %v564
    %v730 = vpack.c.b16 %v567, %v566
    %v731 = vpack.c.b16 %v569, %v568
    %v732 = vpack.c.b16 %v571, %v570
    %v733 = vpack.c.b16 %v573, %v572
    %v734 = vpack.c.b16 %v575, %v574
    %v735 = vpack.c.b16 %v577, %v576
    %v736 = vpack.c.b16 %v579, %v578
    %v737 = vpack.c.b16 %v581, %v580
    %v738 = vpack.c.b16 %v583, %v582
    %v739 = vpack.c.b16 %v585, %v584
    %v740 = vpack.c.b16 %v587, %v586
    %v741 = vpack.c.b16 %v589, %v588
    %v742 = vpack.c.b16 %v591, %v590
    %v743 = vpack.c.b16 %v593, %v592
    %v744 = vpack.c.b16 %v595, %v594
    %v745 = vpack.c.b16 %v597, %v596
    %v746 = vpack.c.b16 %v599, %v598
    %v747 = vpack.c.b16 %v601, %v600
    %v748 = vpack.c.b16 %v603, %v602
    %v749 = vpack.c.b16 %v605, %v604
    %v750 = vpack.c.b16 %v607, %v606
    %v751 = vpack.c.b16 %v609, %v608
    %v752 = vpack.c.b16 %v611, %v610
    %v753 = vpack.c.b16 %v613, %v612
    %v754 = vpack.c.b16 %v615, %v614
    %v755 = vpack.c.b16 %v617, %v616
    %v756 = vpack.c.b16 %v619, %v618
    %v757 = vpack.c.b16 %v621, %v620
    %v758 = vpack.c.b16 %v623, %v622
    %v759 = vpack.c.b16 %v625, %v624
    %v760 = vpack.c.b16 %v627, %v626
    %v761 = vpack.c.b16 %v629, %v628
    %v762 = vpack.c.b16 %v631, %v630
    %v763 = vpack.c.b16 %v633, %v632
    %v764 = vpack.c.b16 %v635, %v634
    %v765 = vpack.c.b16 %v637, %v636
    %v766 = vpack.c.b16 %v639, %v638
    %v767 = vpack.c.b16 %v641, %v640
    %v768 = vpack.c.b16 %v643, %v642
    %v769 = vpack.c.b16 %v645, %v644
    %v770 = vpack.c.b16 %v647, %v646
    %v771 = vpack.c.b16 %v649, %v648
    %v772 = vpack.c.b16 %v651, %v650
    %v773 = vpack.c.b16 %v653, %v652
    %v774 = vpack.c.b16 %v655, %v654
    %v775 = vpack.c.b16 %v657, %v656
    %v776 = vpack.c.b16 %v659, %v658
    %v777 = vpack.c.b16 %v661, %v660
    %v778 = vpack.c.b16 %v663, %v662
    %v779 = vpack.c.b16 %v665, %v664
    %v780 = vpack.c.b16 %v667, %v666
    %v781 = vpack.c.b16 %v669, %v668
    %v782 = vpack.c.b16 %v671, %v670
    %v783 = vpack.c.b16 %v673, %v672
    %v784 = vpack.c.b16 %v675, %v674
    %v785 = vpack.c.b16 %v677, %v676
    %v786 = vpack.c.b16 %v679, %v678
    %v787 = vpack.c.b16 %v681, %v680
    %v788 = vpack.c.b16 %v683, %v682
    %v789 = vpack.c.b16 %v685, %v684
    %v790 = vpack.c.b16 %v687, %v686
    %v791 = vpack.c.b16 %v689, %v688
    %v792 = vpack.c.b16 %v691, %v690
    %v793 = vpack.c.b16 %v693, %v692
    %v794 = vpack.c.b16 %v695, %v694
    %v795 = vpack.c.b16 %v697, %v696
    %v796 = vpack.c.b16 %v699, %v698
    %v797 = vpack.c.b16 %v701, %v700
    %894 = vmatprep.subr.bf16.mxu0 0
    %895 = vmatpush1.bf16.msra.mxu0 %v702
    %896 = vmatprep.subr.bf16.mxu0 0
    %897 = vmatpush1.bf16.msra.mxu0 %v703
    %898 = vmatprep.subr.bf16.mxu0 0
    %899 = vmatpush1.bf16.msra.mxu0 %v704
    %900 = vmatprep.subr.bf16.mxu0 0
    %901 = vmatpush1.bf16.msra.mxu0 %v705
    %902 = vmatprep.subr.bf16.mxu0 0
    %903 = vmatpush1.bf16.msra.mxu0 %v706
    %904 = vmatprep.subr.bf16.mxu0 0
    %905 = vmatpush1.bf16.msra.mxu0 %v707
    %906 = vmatprep.subr.bf16.mxu0 0
    %907 = vmatpush1.bf16.msra.mxu0 %v708
    %908 = vmatprep.subr.bf16.mxu0 0
    %909 = vmatpush1.bf16.msra.mxu0 %v709
    %910 = vmatprep.subr.bf16.mxu0 0
    %911 = vmatpush1.bf16.msra.mxu0 %v710
    %912 = vmatprep.subr.bf16.mxu0 0
    %913 = vmatpush1.bf16.msra.mxu0 %v711
    %914 = vmatprep.subr.bf16.mxu0 0
    %915 = vmatpush1.bf16.msra.mxu0 %v712
    %916 = vmatprep.subr.bf16.mxu0 0
    %917 = vmatpush1.bf16.msra.mxu0 %v713
    %918 = vmatprep.subr.bf16.mxu0 0
    %919 = vmatpush1.bf16.msra.mxu0 %v714
    %920 = vmatprep.subr.bf16.mxu0 0
    %921 = vmatpush1.bf16.msra.mxu0 %v715
    %922 = vmatprep.subr.bf16.mxu0 0
    %923 = vmatpush1.bf16.msra.mxu0 %v716
    %924 = vmatprep.subr.bf16.mxu0 0
    %925 = vmatpush1.bf16.msra.mxu0 %v717
    %926 = vmatprep.mubr.bf16.mxu0 %v270
    %927 = vmatmul.mubr.bf16.gmra.mrb[0].mxu0 %v256
    %v928 = vpop.f32.mrb[0].mxu0
    %v929 = vadd.f32 %v229, %v928
    %v930 = vpop.f32.mrb[0].mxu0
    %v931 = vpop.f32.mrb[0].mxu0
    %v932 = vpop.f32.mrb[0].mxu0
    %933 = vdwg.mxu0
    %934 = vmatprep.subr.bf16.mxu0 0
    %935 = vmatpush1.bf16.msra.mxu0 %v718
    %936 = vmatprep.subr.bf16.mxu0 0
    %937 = vmatpush1.bf16.msra.mxu0 %v719
    %938 = vmatprep.subr.bf16.mxu0 0
    %939 = vmatpush1.bf16.msra.mxu0 %v720
    %940 = vmatprep.subr.bf16.mxu0 0
    %941 = vmatpush1.bf16.msra.mxu0 %v721
    %942 = vmatprep.subr.bf16.mxu0 0
    %943 = vmatpush1.bf16.msra.mxu0 %v722
    %944 = vmatprep.subr.bf16.mxu0 0
    %945 = vmatpush1.bf16.msra.mxu0 %v723
    %946 = vmatprep.subr.bf16.mxu0 0
    %947 = vmatpush1.bf16.msra.mxu0 %v724
    %948 = vmatprep.subr.bf16.mxu0 0
    %949 = vmatpush1.bf16.msra.mxu0 %v725
    %950 = vmatprep.subr.bf16.mxu0 0
    %951 = vmatpush1.bf16.msra.mxu0 %v726
    %952 = vmatprep.subr.bf16.mxu0 0
    %953 = vmatpush1.bf16.msra.mxu0 %v727
    %954 = vmatprep.subr.bf16.mxu0 0
    %955 = vmatpush1.bf16.msra.mxu0 %v728
    %956 = vmatprep.subr.bf16.mxu0 0
    %957 = vmatpush1.bf16.msra.mxu0 %v729
    %958 = vmatprep.subr.bf16.mxu0 0
    %959 = vmatpush1.bf16.msra.mxu0 %v730
    %960 = vmatprep.subr.bf16.mxu0 0
    %961 = vmatpush1.bf16.msra.mxu0 %v731
    %962 = vmatprep.subr.bf16.mxu0 0
    %963 = vmatpush1.bf16.msra.mxu0 %v732
    %964 = vmatprep.subr.bf16.mxu0 0
    %965 = vmatpush1.bf16.msra.mxu0 %v733
    %966 = vmatprep.mubr.bf16.mxu0 %v280
    %967 = vmatmul.mubr.bf16.gmra.mrb[0].mxu0 %v278
    %v968 = vpop.f32.mrb[0].mxu0
    %v969 = vadd.f32 %v929, %v968
    %v970 = vpop.f32.mrb[0].mxu0
    %v971 = vpop.f32.mrb[0].mxu0
    %v972 = vpop.f32.mrb[0].mxu0
    %973 = vdwg.mxu0
    %974 = vmatprep.subr.bf16.mxu0 0
    %975 = vmatpush1.bf16.msra.mxu0 %v734
    %976 = vmatprep.subr.bf16.mxu0 0
    %977 = vmatpush1.bf16.msra.mxu0 %v735
    %978 = vmatprep.subr.bf16.mxu0 0
    %979 = vmatpush1.bf16.msra.mxu0 %v736
    %980 = vmatprep.subr.bf16.mxu0 0
    %981 = vmatpush1.bf16.msra.mxu0 %v737
    %982 = vmatprep.subr.bf16.mxu0 0
    %983 = vmatpush1.bf16.msra.mxu0 %v738
    %984 = vmatprep.subr.bf16.mxu0 0
    %985 = vmatpush1.bf16.msra.mxu0 %v739
    %986 = vmatprep.subr.bf16.mxu0 0
    %987 = vmatpush1.bf16.msra.mxu0 %v740
    %988 = vmatprep.subr.bf16.mxu0 0
    %989 = vmatpush1.bf16.msra.mxu0 %v741
    %990 = vmatprep.subr.bf16.mxu0 0
    %991 = vmatpush1.bf16.msra.mxu0 %v742
    %992 = vmatprep.subr.bf16.mxu0 0
    %993 = vmatpush1.bf16.msra.mxu0 %v743
    %994 = vmatprep.subr.bf16.mxu0 0
    %995 = vmatpush1.bf16.msra.mxu0 %v744
    %996 = vmatprep.subr.bf16.mxu0 0
    %997 = vmatpush1.bf16.msra.mxu0 %v745
    %998 = vmatprep.subr.bf16.mxu0 0
    %999 = vmatpush1.bf16.msra.mxu0 %v746
    %1000 = vmatprep.subr.bf16.mxu0 0
    %1001 = vmatpush1.bf16.msra.mxu0 %v747
    %1002 = vmatprep.subr.bf16.mxu0 0
    %1003 = vmatpush1.bf16.msra.mxu0 %v748
    %1004 = vmatprep.subr.bf16.mxu0 0
    %1005 = vmatpush1.bf16.msra.mxu0 %v749
    %1006 = vmatprep.mubr.bf16.mxu0 %v277
    %1007 = vmatmul.mubr.bf16.gmra.mrb[0].mxu0 %v263
    %v1008 = vpop.f32.mrb[0].mxu0
    %v1009 = vadd.f32 %v969, %v1008
    %v1010 = vpop.f32.mrb[0].mxu0
    %v1011 = vpop.f32.mrb[0].mxu0
    %v1012 = vpop.f32.mrb[0].mxu0
    %1013 = vdwg.mxu0
    %1014 = vmatprep.subr.bf16.mxu0 0
    %1015 = vmatpush1.bf16.msra.mxu0 %v750
    %1016 = vmatprep.subr.bf16.mxu0 0
    %1017 = vmatpush1.bf16.msra.mxu0 %v751
    %1018 = vmatprep.subr.bf16.mxu0 0
    %1019 = vmatpush1.bf16.msra.mxu0 %v752
    %1020 = vmatprep.subr.bf16.mxu0 0
    %1021 = vmatpush1.bf16.msra.mxu0 %v753
    %1022 = vmatprep.subr.bf16.mxu0 0
    %1023 = vmatpush1.bf16.msra.mxu0 %v754
    %1024 = vmatprep.subr.bf16.mxu0 0
    %1025 = vmatpush1.bf16.msra.mxu0 %v755
    %1026 = vmatprep.subr.bf16.mxu0 0
    %1027 = vmatpush1.bf16.msra.mxu0 %v756
    %1028 = vmatprep.subr.bf16.mxu0 0
    %1029 = vmatpush1.bf16.msra.mxu0 %v757
    %1030 = vmatprep.subr.bf16.mxu0 0
    %1031 = vmatpush1.bf16.msra.mxu0 %v758
    %1032 = vmatprep.subr.bf16.mxu0 0
    %1033 = vmatpush1.bf16.msra.mxu0 %v759
    %1034 = vmatprep.subr.bf16.mxu0 0
    %1035 = vmatpush1.bf16.msra.mxu0 %v760
    %1036 = vmatprep.subr.bf16.mxu0 0
    %1037 = vmatpush1.bf16.msra.mxu0 %v761
    %1038 = vmatprep.subr.bf16.mxu0 0
    %1039 = vmatpush1.bf16.msra.mxu0 %v762
    %1040 = vmatprep.subr.bf16.mxu0 0
    %1041 = vmatpush1.bf16.msra.mxu0 %v763
    %1042 = vmatprep.subr.bf16.mxu0 0
    %1043 = vmatpush1.bf16.msra.mxu0 %v764
    %1044 = vmatprep.subr.bf16.mxu0 0
    %1045 = vmatpush1.bf16.msra.mxu0 %v765
    %1046 = vmatprep.mubr.bf16.mxu0 %v281
    %1047 = vmatmul.mubr.bf16.gmra.mrb[0].mxu0 %v279
    %v1048 = vpop.f32.mrb[0].mxu0
    %v1049 = vadd.f32 %v1009, %v1048
    %v1050 = vpop.f32.mrb[0].mxu0
    %v1051 = vpop.f32.mrb[0].mxu0
    %v1052 = vpop.f32.mrb[0].mxu0
    %1053 = vdwg.mxu0
    %1054 = vmatprep.subr.bf16.mxu0 0
    %1055 = vmatpush1.bf16.msra.mxu0 %v766
    %1056 = vmatprep.subr.bf16.mxu0 0
    %1057 = vmatpush1.bf16.msra.mxu0 %v767
    %1058 = vmatprep.subr.bf16.mxu0 0
    %1059 = vmatpush1.bf16.msra.mxu0 %v768
    %1060 = vmatprep.subr.bf16.mxu0 0
    %1061 = vmatpush1.bf16.msra.mxu0 %v769
    %1062 = vmatprep.subr.bf16.mxu0 0
    %1063 = vmatpush1.bf16.msra.mxu0 %v770
    %1064 = vmatprep.subr.bf16.mxu0 0
    %1065 = vmatpush1.bf16.msra.mxu0 %v771
    %1066 = vmatprep.subr.bf16.mxu0 0
    %1067 = vmatpush1.bf16.msra.mxu0 %v772
    %1068 = vmatprep.subr.bf16.mxu0 0
    %1069 = vmatpush1.bf16.msra.mxu0 %v773
    %1070 = vmatprep.subr.bf16.mxu0 0
    %1071 = vmatpush1.bf16.msra.mxu0 %v774
    %1072 = vmatprep.subr.bf16.mxu0 0
    %1073 = vmatpush1.bf16.msra.mxu0 %v775
    %1074 = vmatprep.subr.bf16.mxu0 0
    %1075 = vmatpush1.bf16.msra.mxu0 %v776
    %1076 = vmatprep.subr.bf16.mxu0 0
    %1077 = vmatpush1.bf16.msra.mxu0 %v777
    %1078 = vmatprep.subr.bf16.mxu0 0
    %1079 = vmatpush1.bf16.msra.mxu0 %v778
    %1080 = vmatprep.subr.bf16.mxu0 0
    %1081 = vmatpush1.bf16.msra.mxu0 %v779
    %1082 = vmatprep.subr.bf16.mxu0 0
    %1083 = vmatpush1.bf16.msra.mxu0 %v780
    %1084 = vmatprep.subr.bf16.mxu0 0
    %1085 = vmatpush1.bf16.msra.mxu0 %v781
    %1086 = vmatprep.mubr.bf16.mxu0 %v303
    %1087 = vmatmul.mubr.bf16.gmra.mrb[0].mxu0 %v296
    %v1088 = vpop.f32.mrb[0].mxu0
    %v1089 = vadd.f32 %v1049, %v1088
    %v1090 = vpop.f32.mrb[0].mxu0
    %v1091 = vpop.f32.mrb[0].mxu0
    %v1092 = vpop.f32.mrb[0].mxu0
    %1093 = vdwg.mxu0
    %1094 = vmatprep.subr.bf16.mxu0 0
    %1095 = vmatpush1.bf16.msra.mxu0 %v782
    %1096 = vmatprep.subr.bf16.mxu0 0
    %1097 = vmatpush1.bf16.msra.mxu0 %v783
    %1098 = vmatprep.subr.bf16.mxu0 0
    %1099 = vmatpush1.bf16.msra.mxu0 %v784
    %1100 = vmatprep.subr.bf16.mxu0 0
    %1101 = vmatpush1.bf16.msra.mxu0 %v785
    %1102 = vmatprep.subr.bf16.mxu0 0
    %1103 = vmatpush1.bf16.msra.mxu0 %v786
    %1104 = vmatprep.subr.bf16.mxu0 0
    %1105 = vmatpush1.bf16.msra.mxu0 %v787
    %1106 = vmatprep.subr.bf16.mxu0 0
    %1107 = vmatpush1.bf16.msra.mxu0 %v788
    %1108 = vmatprep.subr.bf16.mxu0 0
    %1109 = vmatpush1.bf16.msra.mxu0 %v789
    %1110 = vmatprep.subr.bf16.mxu0 0
    %1111 = vmatpush1.bf16.msra.mxu0 %v790
    %1112 = vmatprep.subr.bf16.mxu0 0
    %1113 = vmatpush1.bf16.msra.mxu0 %v791
    %1114 = vmatprep.subr.bf16.mxu0 0
    %1115 = vmatpush1.bf16.msra.mxu0 %v792
    %1116 = vmatprep.subr.bf16.mxu0 0
    %1117 = vmatpush1.bf16.msra.mxu0 %v793
    %1118 = vmatprep.subr.bf16.mxu0 0
    %1119 = vmatpush1.bf16.msra.mxu0 %v794
    %1120 = vmatprep.subr.bf16.mxu0 0
    %1121 = vmatpush1.bf16.msra.mxu0 %v795
    %1122 = vmatprep.subr.bf16.mxu0 0
    %1123 = vmatpush1.bf16.msra.mxu0 %v796
    %1124 = vmatprep.subr.bf16.mxu0 0
    %1125 = vmatpush1.bf16.msra.mxu0 %v797
    %1126 = vmatprep.mubr.bf16.mxu0 %v305
    %1127 = vmatmul.mubr.bf16.gmra.mrb[0].mxu0 %v304
    %v1128 = vpop.f32.mrb[0].mxu0
    %v1129 = vadd.f32 %v1089, %v1128
    %v1130 = vpop.f32.mrb[0].mxu0
    %v1131 = vpop.f32.mrb[0].mxu0
    %v1132 = vpop.f32.mrb[0].mxu0
    %1133 = vdwg.mxu0
    %v1134 = vmax.f32 %v1129, 0.0
    %1135 = vst [vmem:[#allocation5] sm:$0x3] %v1134
    // Predicated region
    $region18: #{shared_network_forward.1} parent=1 // pred_check
      _
    $region19: #{shared_network_forward.1} parent=1 // pred_check_branch
      %1137 = sbr.rel (0) target = $region21
    $region20: #{shared_network_forward.1} parent=1 // pred_region
      %s1139 = ssub.s32 32, 32
      %1140 = vsyncadd [#allocation4], %s1139
      %s1142 = sshll.u32 [#allocation5], 4
      %s1143 = int_to_ptr.vmem [resolvable:$true] %s1142
      %1145 = dma.vmem_to_hbm [thread:$0]  %s1143, 32, %s3, [#allocation4]
    $region21: #{shared_network_forward.1} parent=1 // pred_fallthru
      _
    // Predicated region
    $region22: #{shared_network_forward.1} parent=1 // pred_check
      _
    $region23: #{shared_network_forward.1} parent=1 // pred_check_branch
      %1147 = sbr.rel (0) target = $region25
    $region24: #{shared_network_forward.1} parent=1 // pred_region
      %1148 = dma.done [#allocation4], 32
    $region25: #{shared_network_forward.1} parent=1 // pred_fallthru
      _
    %1149 = vsyncpa [#allocation3], 1
    %1150 = vsyncpa [#allocation4], 1

</llo_original>
